<compile_context>
chip_gen: v7x
topology: tpu7x:2x2x1
jax: 0.10.0
libtpu: 0.0.40
codegen_flags: <defaults>
</compile_context>

<pallas_src>
import numpy as np
import jax
import jax.numpy as jnp
from jax.experimental import pallas as pl
from jax.experimental.pallas import tpu as pltpu


def _round_up(x, m):
    return ((x + m - 1) // m) * m


def hole_kernel(h_ref, r_ref, t_ref, cos_ref, sin_ref, o_ref):
    """HolE score for one batch tile.

    h_ref, r_ref, t_ref : (TM, k) f32 VMEM tiles (head / relation / tail rows)
    cos_ref, sin_ref    : (k, k)  f32 DFT basis matrices, C[n,f]=cos(2*pi*n*f/k),
                          S[n,f]=sin(2*pi*n*f/k) (both symmetric)
    o_ref               : (1, TM) f32 lane-dense score row for this tile
    """
    f32 = jnp.float32
    h = h_ref[...]
    r = r_ref[...]
    t = t_ref[...]
    c = cos_ref[...]
    s = sin_ref[...]
    k = h.shape[1]

    # fft(x)[f] = (x @ C)[f] - i * (x @ S)[f]   for real x.  (MXU matmuls)
    hc = jnp.dot(h, c, preferred_element_type=f32)
    hs = jnp.dot(h, s, preferred_element_type=f32)
    tc = jnp.dot(t, c, preferred_element_type=f32)
    ts = jnp.dot(t, s, preferred_element_type=f32)
    rc = jnp.dot(r, c, preferred_element_type=f32)
    rs = jnp.dot(r, s, preferred_element_type=f32)

    # P = conj(fft(h)) * fft(t)
    pr = hc * tc + hs * ts          # Re(P)
    pi = hs * tc - hc * ts          # Im(P)

    # score[m] = sum_n r[m,n] * Re(ifft(P))[m,n]
    #          = (1/k) * sum_f (Re(P)*(r@C) - Im(P)*(r@S))[m, f]
    x = pr * rc - pi * rs           # (TM, k)
    xt = x.T                        # (k, TM): put the batch dim on lanes
    o_ref[...] = jnp.sum(xt, axis=0, keepdims=True) * (1.0 / k)   # (1, TM)


def hole_forward(h, r, t, *, tm=1024):
    """h, r, t: (M, k) float32 embedding rows -> (M,) float32 scores."""
    assert tm % 128 == 0
    M, k = h.shape
    h = h.astype(jnp.float32)
    r = r.astype(jnp.float32)
    t = t.astype(jnp.float32)

    # Tile size: don't over-pad tiny batches; keep sublane (8) / lane (128)
    # alignment rules satisfied in all cases.
    tm_eff = min(tm, _round_up(M, 8))
    m_pad = _round_up(M, tm_eff)
    if m_pad != M:
        pad = m_pad - M
        h = jnp.pad(h, ((0, pad), (0, 0)))   # zero rows -> zero scores, sliced off below
        r = jnp.pad(r, ((0, pad), (0, 0)))
        t = jnp.pad(t, ((0, pad), (0, 0)))
    num_tiles = m_pad // tm_eff

    # Constant DFT basis matrices (built in float64, cast to f32).
    n = np.arange(k)
    ang = 2.0 * np.pi * (np.outer(n, n) % k).astype(np.float64) / k
    cos_m = jnp.asarray(np.cos(ang), dtype=jnp.float32)
    sin_m = jnp.asarray(np.sin(ang), dtype=jnp.float32)

    out = pl.pallas_call(
        hole_kernel,
        out_shape=jax.ShapeDtypeStruct((1, m_pad), jnp.float32),
        grid=(num_tiles,),
        in_specs=[
            pl.BlockSpec((tm_eff, k), lambda i: (i, 0)),
            pl.BlockSpec((tm_eff, k), lambda i: (i, 0)),
            pl.BlockSpec((tm_eff, k), lambda i: (i, 0)),
            pl.BlockSpec((k, k), lambda i: (0, 0)),   # constant block: no re-DMA per step
            pl.BlockSpec((k, k), lambda i: (0, 0)),
        ],
        out_specs=pl.BlockSpec((1, tm_eff), lambda i: (0, i)),
        compiler_params=pltpu.CompilerParams(
            dimension_semantics=("parallel",)),
    )(h, r, t, cos_m, sin_m)
    return out[0, :M]


def _renorm_rows(w, maxnorm=1.0):
    """Equivalent of torch renorm_(p=2, dim=0, maxnorm=1)."""
    nrm = jnp.linalg.norm(w, axis=1, keepdims=True)
    scale = jnp.where(nrm > maxnorm, maxnorm / jnp.maximum(nrm, 1e-12), 1.0)
    return w * scale


def _ref_score(h, r, t):
    """Pure-JAX reference matching the PyTorch FFT-based forward."""
    fh = jnp.fft.fft(h.astype(jnp.float32), axis=-1)
    ft = jnp.fft.fft(t.astype(jnp.float32), axis=-1)
    ccorr = jnp.fft.ifft(jnp.conj(fh) * ft, axis=-1).real
    return jnp.sum(r * ccorr, axis=-1)


if __name__ == "__main__":
    # Small, forward-consistent sizes.
    n_e, n_r, k, M = 32, 8, 32, 8

    key = jax.random.PRNGKey(0)
    k_e, k_r, k_idx = jax.random.split(key, 3)

    # initialize_embeddings(): uniform(-6/sqrt(k), 6/sqrt(k)), then renorm rows.
    lim = 6.0 / np.sqrt(k)
    emb_E = jax.random.uniform(k_e, (n_e, k), jnp.float32, -lim, lim)
    emb_R = jax.random.uniform(k_r, (n_r, k), jnp.float32, -lim, lim)
    emb_E = _renorm_rows(emb_E)
    emb_R = _renorm_rows(emb_R)  # initialized but unused in forward (as in reference)

    k_h, k_l, k_t = jax.random.split(k_idx, 3)
    hs = jax.random.randint(k_h, (M,), 0, n_e)
    ls = jax.random.randint(k_l, (M,), 0, n_r)
    ts = jax.random.randint(k_t, (M,), 0, n_e)

    # Embedding gathers (index -> row) done in plain JAX outside the kernel.
    # Relation lookup uses emb_E, faithfully reproducing the reference quirk.
    h = emb_E[hs]
    r = emb_E[ls]
    t = emb_E[ts]

    f = jax.block_until_ready(hole_forward(h, r, t))
    f_ref = jax.block_until_ready(_ref_score(h, r, t))

    assert f.shape == (M,)
    assert np.allclose(np.asarray(f), np.asarray(f_ref), rtol=2e-3, atol=2e-4), (
        np.asarray(f), np.asarray(f_ref))

    print("KERNEL_OK")
</pallas_src>

<mosaic_0001>
module attributes {stable_mosaic.version = 11 : i64} {
  func.func @hole_kernel(%arg0: i32, %arg1: memref<8x32xf32, #tpu.memory_space<vmem>>, %arg2: memref<8x32xf32, #tpu.memory_space<vmem>>, %arg3: memref<8x32xf32, #tpu.memory_space<vmem>>, %arg4: memref<32x32xf32, #tpu.memory_space<vmem>>, %arg5: memref<32x32xf32, #tpu.memory_space<vmem>>, %arg6: memref<1x8xf32, #tpu.memory_space<vmem>>) attributes {dimension_semantics = [#tpu.dimension_semantics<parallel>], iteration_bounds = array<i64: 1>, scalar_prefetch = 0 : i64, scratch_operands = 0 : i64, tpu.core_type = #tpu.core_type<tc>, window_params = [{transform_indices = @transform_0, window_bounds = array<i64: 8, 32>}, {transform_indices = @transform_1, window_bounds = array<i64: 8, 32>}, {transform_indices = @transform_2, window_bounds = array<i64: 8, 32>}, {pipeline_mode = #tpu.pipeline_mode<synchronous>, transform_indices = @transform_3, window_bounds = array<i64: 32, 32>}, {pipeline_mode = #tpu.pipeline_mode<synchronous>, transform_indices = @transform_4, window_bounds = array<i64: 32, 32>}, {transform_indices = @transform_5, window_bounds = array<i64: 1, 8>}]} {
    %c0 = arith.constant 0 : index
    %c0_0 = arith.constant 0 : index
    %0 = vector.load %arg1[%c0, %c0_0] : memref<8x32xf32, #tpu.memory_space<vmem>>, vector<8x32xf32>
    %c0_1 = arith.constant 0 : index
    %c0_2 = arith.constant 0 : index
    %1 = vector.load %arg2[%c0_1, %c0_2] : memref<8x32xf32, #tpu.memory_space<vmem>>, vector<8x32xf32>
    %c0_3 = arith.constant 0 : index
    %c0_4 = arith.constant 0 : index
    %2 = vector.load %arg3[%c0_3, %c0_4] : memref<8x32xf32, #tpu.memory_space<vmem>>, vector<8x32xf32>
    %c0_5 = arith.constant 0 : index
    %c0_6 = arith.constant 0 : index
    %3 = vector.load %arg4[%c0_5, %c0_6] : memref<32x32xf32, #tpu.memory_space<vmem>>, vector<32x32xf32>
    %c0_7 = arith.constant 0 : index
    %c0_8 = arith.constant 0 : index
    %4 = vector.load %arg5[%c0_7, %c0_8] : memref<32x32xf32, #tpu.memory_space<vmem>>, vector<32x32xf32>
    %cst = arith.constant dense<0.000000e+00> : vector<8x32xf32>
    %5 = tpu.matmul %0, %3, %cst {dimension_numbers = #tpu.dot_dimension_numbers<[1], [0], [0], [1], [0, 0, 1, 1], [], []>} : vector<8x32xf32>, vector<32x32xf32>, vector<8x32xf32> -> vector<8x32xf32>
    %cst_9 = arith.constant dense<0.000000e+00> : vector<8x32xf32>
    %6 = tpu.matmul %0, %4, %cst_9 {dimension_numbers = #tpu.dot_dimension_numbers<[1], [0], [0], [1], [0, 0, 1, 1], [], []>} : vector<8x32xf32>, vector<32x32xf32>, vector<8x32xf32> -> vector<8x32xf32>
    %cst_10 = arith.constant dense<0.000000e+00> : vector<8x32xf32>
    %7 = tpu.matmul %2, %3, %cst_10 {dimension_numbers = #tpu.dot_dimension_numbers<[1], [0], [0], [1], [0, 0, 1, 1], [], []>} : vector<8x32xf32>, vector<32x32xf32>, vector<8x32xf32> -> vector<8x32xf32>
    %cst_11 = arith.constant dense<0.000000e+00> : vector<8x32xf32>
    %8 = tpu.matmul %2, %4, %cst_11 {dimension_numbers = #tpu.dot_dimension_numbers<[1], [0], [0], [1], [0, 0, 1, 1], [], []>} : vector<8x32xf32>, vector<32x32xf32>, vector<8x32xf32> -> vector<8x32xf32>
    %cst_12 = arith.constant dense<0.000000e+00> : vector<8x32xf32>
    %9 = tpu.matmul %1, %3, %cst_12 {dimension_numbers = #tpu.dot_dimension_numbers<[1], [0], [0], [1], [0, 0, 1, 1], [], []>} : vector<8x32xf32>, vector<32x32xf32>, vector<8x32xf32> -> vector<8x32xf32>
    %cst_13 = arith.constant dense<0.000000e+00> : vector<8x32xf32>
    %10 = tpu.matmul %1, %4, %cst_13 {dimension_numbers = #tpu.dot_dimension_numbers<[1], [0], [0], [1], [0, 0, 1, 1], [], []>} : vector<8x32xf32>, vector<32x32xf32>, vector<8x32xf32> -> vector<8x32xf32>
    %11 = arith.mulf %5, %7 : vector<8x32xf32>
    %12 = arith.mulf %6, %8 : vector<8x32xf32>
    %13 = arith.addf %11, %12 : vector<8x32xf32>
    %14 = arith.mulf %6, %7 : vector<8x32xf32>
    %15 = arith.mulf %5, %8 : vector<8x32xf32>
    %16 = arith.subf %14, %15 : vector<8x32xf32>
    %17 = arith.mulf %13, %9 : vector<8x32xf32>
    %18 = arith.mulf %16, %10 : vector<8x32xf32>
    %19 = arith.subf %17, %18 : vector<8x32xf32>
    %20 = tpu.transpose %19, [1, 0] : vector<8x32xf32> -> vector<32x8xf32>
    %cst_14 = arith.constant dense<0.000000e+00> : vector<8xf32>
    %21 = vector.multi_reduction <add>, %20, %cst_14 [0] : vector<32x8xf32> to vector<8xf32>
    %22 = vector.shape_cast %21 : vector<8xf32> to vector<1x8xf32>
    %cst_15 = arith.constant 3.125000e-02 : f32
    %23 = vector.broadcast %cst_15 : f32 to vector<1x8xf32>
    %24 = arith.mulf %22, %23 : vector<1x8xf32>
    %c0_16 = arith.constant 0 : index
    %c0_17 = arith.constant 0 : index
    %25 = vector.load %arg6[%c0_16, %c0_17] : memref<1x8xf32, #tpu.memory_space<vmem>>, vector<1x8xf32>
    tpu.vector_store %arg6[%c0_16, %c0_17], %24 {strides = array<i32>} : memref<1x8xf32, #tpu.memory_space<vmem>>, vector<1x8xf32>,
    return
  }
  func.func @transform_0(%arg0: i32) -> (i32, i32) {
    %c0_i32 = arith.constant 0 : i32
    %c0_i32_0 = arith.constant 0 : i32
    return %arg0, %c0_i32 : i32, i32
  }
  func.func @transform_1(%arg0: i32) -> (i32, i32) {
    %c0_i32 = arith.constant 0 : i32
    %c0_i32_0 = arith.constant 0 : i32
    return %arg0, %c0_i32 : i32, i32
  }
  func.func @transform_2(%arg0: i32) -> (i32, i32) {
    %c0_i32 = arith.constant 0 : i32
    %c0_i32_0 = arith.constant 0 : i32
    return %arg0, %c0_i32 : i32, i32
  }
  func.func @transform_3(%arg0: i32) -> (i32, i32) {
    %c0_i32 = arith.constant 0 : i32
    %c0_i32_0 = arith.constant 0 : i32
    %c0_i32_1 = arith.constant 0 : i32
    return %c0_i32, %c0_i32_0 : i32, i32
  }
  func.func @transform_4(%arg0: i32) -> (i32, i32) {
    %c0_i32 = arith.constant 0 : i32
    %c0_i32_0 = arith.constant 0 : i32
    %c0_i32_1 = arith.constant 0 : i32
    return %c0_i32, %c0_i32_0 : i32, i32
  }
  func.func @transform_5(%arg0: i32) -> (i32, i32) {
    %c0_i32 = arith.constant 0 : i32
    %c0_i32_0 = arith.constant 0 : i32
    return %c0_i32, %arg0 : i32, i32
  }
}

</mosaic_0001>

<llo_original>
// kernel: tpu_custom_call.1
$region0: #{tpu_custom_call.1}
  #allocation0 [shape = 'u32[]', space=smem, size = 0x4, offset = 0x4, fixed_abs, tag = 'smem constant byte address 0x4 - core index']
  #allocation1 [shape = 'u32[144,128]{1,0:T(1,128)}', space=vmem, size = 0x12000, scoped, tag = 'internal scratch']
  %s0 = inlined_call_operand.hbm [shape: f32[8,32], index: 0, kind: input, shape index: {}]
  %s1 = inlined_call_operand.hbm [shape: f32[8,32], index: 1, kind: input, shape index: {}]
  %s2 = inlined_call_operand.hbm [shape: f32[8,32], index: 2, kind: input, shape index: {}]
  %s3 = inlined_call_operand.hbm [shape: f32[32,32], index: 3, kind: input, shape index: {}]
  %s4 = inlined_call_operand.hbm [shape: f32[32,32], index: 4, kind: input, shape index: {}]
  %s5 = inlined_call_operand.hbm [shape: f32[1,8], index: 5, kind: output, shape index: {}]
  %s6 = sld [smem:[#allocation0]]
  $region50: #{tpu_custom_call.1} parent=0
    _
  %s8 = ssub.s32 1, %s6
  %s9 = scalar_select 0, %s8, %s6
  $region1: #{tpu_custom_call.1} parent=0
    #allocation2 [shape = 'u8[4096]{0}', space=vmem, size = 0x1000, scoped, tag = 'input window, operand 0, single buffered']
    #allocation3 [shape = 's32[1]{0}', space=sflag, size = 0x4, scoped, tag = 'scoped memory for tpu_custom_call.1']
    #allocation4 [shape = 's32[1]{0}', space=sflag, size = 0x4, scoped, tag = 'scoped memory for tpu_custom_call.1']
    #allocation5 [shape = 'u8[4096]{0}', space=vmem, size = 0x1000, scoped, tag = 'input window, operand 1, single buffered']
    #allocation6 [shape = 's32[1]{0}', space=sflag, size = 0x4, scoped, tag = 'scoped memory for tpu_custom_call.1']
    #allocation7 [shape = 'u8[4096]{0}', space=vmem, size = 0x1000, scoped, tag = 'input window, operand 2, single buffered']
    #allocation8 [shape = 'u8[16384]{0}', space=vmem, size = 0x4000, scoped, tag = 'input window, operand 3, single buffered']
    #allocation9 [shape = 's32[1]{0}', space=sflag, size = 0x4, scoped, tag = 'scoped memory for tpu_custom_call.1']
    #allocation10 [shape = 'u8[16384]{0}', space=vmem, size = 0x4000, scoped, tag = 'input window, operand 4, single buffered']
    #allocation11 [shape = 'u8[512]{0}', space=vmem, size = 0x400, scoped, tag = 'output window, operand 0, single buffered']
    %10 = vsyncpa [#allocation3], 0
    %11 = vsyncpa [#allocation6], 0
    %12 = vsyncpa [#allocation9], 0
    %13 = vsyncpa [#allocation4], 0
    // Predicated region
    $region2: #{tpu_custom_call.1} parent=1 // pred_check
      _
    $region3: #{tpu_custom_call.1} parent=1 // pred_check_branch
      %15 = sbr.rel (0) target = $region5
    $region4: #{tpu_custom_call.1} parent=1 // pred_region
      %s17 = ssub.s32 128, 128
      %18 = vsyncadd [#allocation3], %s17
      %s20 = sshll.u32 [#allocation2], 4
      %s21 = int_to_ptr.vmem [resolvable:$true] %s20
      %23 = dma.hbm_to_vmem [thread:$0]  %s0, 128, %s21, [#allocation3]
    $region5: #{tpu_custom_call.1} parent=1 // pred_fallthru
      _
    // Predicated region
    $region6: #{tpu_custom_call.1} parent=1 // pred_check
      _
    $region7: #{tpu_custom_call.1} parent=1 // pred_check_branch
      %25 = sbr.rel (0) target = $region9
    $region8: #{tpu_custom_call.1} parent=1 // pred_region
      %s27 = ssub.s32 128, 128
      %28 = vsyncadd [#allocation6], %s27
      %s30 = sshll.u32 [#allocation5], 4
      %s31 = int_to_ptr.vmem [resolvable:$true] %s30
      %33 = dma.hbm_to_vmem [thread:$0]  %s1, 128, %s31, [#allocation6]
    $region9: #{tpu_custom_call.1} parent=1 // pred_fallthru
      _
    // Predicated region
    $region10: #{tpu_custom_call.1} parent=1 // pred_check
      _
    $region11: #{tpu_custom_call.1} parent=1 // pred_check_branch
      %35 = sbr.rel (0) target = $region13
    $region12: #{tpu_custom_call.1} parent=1 // pred_region
      %s37 = ssub.s32 128, 128
      %38 = vsyncadd [#allocation6], %s37
      %s40 = sshll.u32 [#allocation7], 4
      %s41 = int_to_ptr.vmem [resolvable:$true] %s40
      %43 = dma.hbm_to_vmem [thread:$0]  %s2, 128, %s41, [#allocation6]
    $region13: #{tpu_custom_call.1} parent=1 // pred_fallthru
      _
    // Predicated region
    $region14: #{tpu_custom_call.1} parent=1 // pred_check
      _
    $region15: #{tpu_custom_call.1} parent=1 // pred_check_branch
      %45 = sbr.rel (0) target = $region17
    $region16: #{tpu_custom_call.1} parent=1 // pred_region
      %s47 = ssub.s32 512, 512
      %48 = vsyncadd [#allocation9], %s47
      %s49 = sshll.u32 [#allocation8], 4
      %s50 = int_to_ptr.vmem [resolvable:$true] %s49
      %55 = dma.hbm_to_vmem [thread:$0]  %s3, 512, %s50, [#allocation9], 128, 128, 8
    $region17: #{tpu_custom_call.1} parent=1 // pred_fallthru
      _
    // Predicated region
    $region18: #{tpu_custom_call.1} parent=1 // pred_check
      _
    $region19: #{tpu_custom_call.1} parent=1 // pred_check_branch
      %57 = sbr.rel (0) target = $region21
    $region20: #{tpu_custom_call.1} parent=1 // pred_region
      %s59 = ssub.s32 512, 512
      %60 = vsyncadd [#allocation9], %s59
      %s61 = sshll.u32 [#allocation10], 4
      %s62 = int_to_ptr.vmem [resolvable:$true] %s61
      %67 = dma.hbm_to_vmem [thread:$0]  %s4, 512, %s62, [#allocation9], 128, 128, 8
    $region21: #{tpu_custom_call.1} parent=1 // pred_fallthru
      _
    // Predicated region
    $region22: #{tpu_custom_call.1} parent=1 // pred_check
      _
    $region23: #{tpu_custom_call.1} parent=1 // pred_check_branch
      %69 = sbr.rel (0) target = $region25
    $region24: #{tpu_custom_call.1} parent=1 // pred_region
      %70 = dma.done [#allocation3], 128
    $region25: #{tpu_custom_call.1} parent=1 // pred_fallthru
      _
    // Predicated region
    $region26: #{tpu_custom_call.1} parent=1 // pred_check
      _
    $region27: #{tpu_custom_call.1} parent=1 // pred_check_branch
      %72 = sbr.rel (0) target = $region29
    $region28: #{tpu_custom_call.1} parent=1 // pred_region
      %73 = dma.done [#allocation6], 128
    $region29: #{tpu_custom_call.1} parent=1 // pred_fallthru
      _
    // Predicated region
    $region30: #{tpu_custom_call.1} parent=1 // pred_check
      _
    $region31: #{tpu_custom_call.1} parent=1 // pred_check_branch
      %75 = sbr.rel (0) target = $region33
    $region32: #{tpu_custom_call.1} parent=1 // pred_region
      %76 = dma.done [#allocation6], 128
    $region33: #{tpu_custom_call.1} parent=1 // pred_fallthru
      _
    // Predicated region
    $region34: #{tpu_custom_call.1} parent=1 // pred_check
      _
    $region35: #{tpu_custom_call.1} parent=1 // pred_check_branch
      %78 = sbr.rel (0) target = $region37
    $region36: #{tpu_custom_call.1} parent=1 // pred_region
      %79 = dma.done [#allocation9], 512
    $region37: #{tpu_custom_call.1} parent=1 // pred_fallthru
      _
    // Predicated region
    $region38: #{tpu_custom_call.1} parent=1 // pred_check
      _
    $region39: #{tpu_custom_call.1} parent=1 // pred_check_branch
      %81 = sbr.rel (0) target = $region41
    $region40: #{tpu_custom_call.1} parent=1 // pred_region
      %82 = dma.done [#allocation9], 512
    $region41: #{tpu_custom_call.1} parent=1 // pred_fallthru
      _
    %v83 = vld [vmem:[#allocation2] sm:$0xff]
    %v84 = vld [vmem:[#allocation5] sm:$0xff]
    %v85 = vld [vmem:[#allocation7] sm:$0xff]
    %v86 = vld [vmem:[#allocation8] sm:$0xff]
    %v87 = vld [vmem:[#allocation8 + $0x8] sm:$0xff]
    %v88 = vld [vmem:[#allocation8 + $0x10] sm:$0xff]
    %v89 = vld [vmem:[#allocation8 + $0x18] sm:$0xff]
    %v90 = vld [vmem:[#allocation10] sm:$0xff]
    %v91 = vld [vmem:[#allocation10 + $0x8] sm:$0xff]
    %v92 = vld [vmem:[#allocation10 + $0x10] sm:$0xff]
    %v93 = vld [vmem:[#allocation10 + $0x18] sm:$0xff]
    %vm94 = vcmask 261120
    %v96 = vsel %vm94, %v83, 0
    %98 = vmatprep.subr.mxu0 0.0
    %99 = vmatpush1.msra.mxu0 %v86
    %100 = vmatprep.subr.mxu0 0.0
    %101 = vmatpush1.msra.mxu0 %v87
    %102 = vmatprep.subr.mxu0 0.0
    %103 = vmatpush1.msra.mxu0 %v88
    %104 = vmatprep.subr.mxu0 0.0
    %105 = vmatpush1.msra.mxu0 %v89
    %106 = vmatprep.subr.mxu0 0.0
    %107 = vmatpush1.msra.mxu0 0.0
    %108 = vmatprep.subr.mxu0 0.0
    %109 = vmatpush1.msra.mxu0 0.0
    %110 = vmatprep.subr.mxu0 0.0
    %111 = vmatpush1.msra.mxu0 0.0
    %112 = vmatprep.subr.mxu0 0.0
    %113 = vmatpush1.msra.mxu0 0.0
    %114 = vmatprep.subr.mxu0 0.0
    %115 = vmatpush1.msra.mxu0 0.0
    %116 = vmatprep.subr.mxu0 0.0
    %117 = vmatpush1.msra.mxu0 0.0
    %118 = vmatprep.subr.mxu0 0.0
    %119 = vmatpush1.msra.mxu0 0.0
    %120 = vmatprep.subr.mxu0 0.0
    %121 = vmatpush1.msra.mxu0 0.0
    %122 = vmatprep.subr.mxu0 0.0
    %123 = vmatpush1.msra.mxu0 0.0
    %124 = vmatprep.subr.mxu0 0.0
    %125 = vmatpush1.msra.mxu0 0.0
    %126 = vmatprep.subr.mxu0 0.0
    %127 = vmatpush1.msra.mxu0 0.0
    %128 = vmatprep.subr.mxu0 0.0
    %129 = vmatpush1.msra.mxu0 0.0
    %130 = vmatprep.subr.mxu0 0.0
    %131 = vmatpush1.msra.mxu0 0.0
    %132 = vmatprep.subr.mxu0 0.0
    %133 = vmatpush1.msra.mxu0 0.0
    %134 = vmatprep.subr.mxu0 0.0
    %135 = vmatpush1.msra.mxu0 0.0
    %136 = vmatprep.subr.mxu0 0.0
    %137 = vmatpush1.msra.mxu0 0.0
    %138 = vmatprep.subr.mxu0 0.0
    %139 = vmatpush1.msra.mxu0 0.0
    %140 = vmatprep.subr.mxu0 0.0
    %141 = vmatpush1.msra.mxu0 0.0
    %142 = vmatprep.subr.mxu0 0.0
    %143 = vmatpush1.msra.mxu0 0.0
    %144 = vmatprep.subr.mxu0 0.0
    %145 = vmatpush1.msra.mxu0 0.0
    %146 = vmatprep.subr.mxu0 0.0
    %147 = vmatpush1.msra.mxu0 0.0
    %148 = vmatprep.subr.mxu0 0.0
    %149 = vmatpush1.msra.mxu0 0.0
    %150 = vmatprep.subr.mxu0 0.0
    %151 = vmatpush1.msra.mxu0 0.0
    %152 = vmatprep.subr.mxu0 0.0
    %153 = vmatpush1.msra.mxu0 0.0
    %154 = vmatprep.subr.mxu0 0.0
    %155 = vmatpush1.msra.mxu0 0.0
    %156 = vmatprep.subr.mxu0 0.0
    %157 = vmatpush1.msra.mxu0 0.0
    %158 = vmatprep.subr.mxu0 0.0
    %159 = vmatpush1.msra.mxu0 0.0
    %160 = vmatprep.subr.mxu0 0.0
    %161 = vmatpush1.msra.mxu0 0.0
    %162 = vmatprep.mubr.f32.mxu0 0.0
    %163 = vmatmul.mubr.f32.gmra.mrb[0].mxu0 %v96
    %v164 = vpop.f32.mrb[0].mxu0
    %v165 = vadd.f32 0.0, %v164
    %v166 = vpop.f32.mrb[0].mxu0
    %167 = vdwg.mxu0
    %168 = vmatprep.subr.mxu0 0.0
    %169 = vmatpush1.msra.mxu0 %v90
    %170 = vmatprep.subr.mxu0 0.0
    %171 = vmatpush1.msra.mxu0 %v91
    %172 = vmatprep.subr.mxu0 0.0
    %173 = vmatpush1.msra.mxu0 %v92
    %174 = vmatprep.subr.mxu0 0.0
    %175 = vmatpush1.msra.mxu0 %v93
    %176 = vmatprep.subr.mxu0 0.0
    %177 = vmatpush1.msra.mxu0 0.0
    %178 = vmatprep.subr.mxu0 0.0
    %179 = vmatpush1.msra.mxu0 0.0
    %180 = vmatprep.subr.mxu0 0.0
    %181 = vmatpush1.msra.mxu0 0.0
    %182 = vmatprep.subr.mxu0 0.0
    %183 = vmatpush1.msra.mxu0 0.0
    %184 = vmatprep.subr.mxu0 0.0
    %185 = vmatpush1.msra.mxu0 0.0
    %186 = vmatprep.subr.mxu0 0.0
    %187 = vmatpush1.msra.mxu0 0.0
    %188 = vmatprep.subr.mxu0 0.0
    %189 = vmatpush1.msra.mxu0 0.0
    %190 = vmatprep.subr.mxu0 0.0
    %191 = vmatpush1.msra.mxu0 0.0
    %192 = vmatprep.subr.mxu0 0.0
    %193 = vmatpush1.msra.mxu0 0.0
    %194 = vmatprep.subr.mxu0 0.0
    %195 = vmatpush1.msra.mxu0 0.0
    %196 = vmatprep.subr.mxu0 0.0
    %197 = vmatpush1.msra.mxu0 0.0
    %198 = vmatprep.subr.mxu0 0.0
    %199 = vmatpush1.msra.mxu0 0.0
    %200 = vmatprep.subr.mxu0 0.0
    %201 = vmatpush1.msra.mxu0 0.0
    %202 = vmatprep.subr.mxu0 0.0
    %203 = vmatpush1.msra.mxu0 0.0
    %204 = vmatprep.subr.mxu0 0.0
    %205 = vmatpush1.msra.mxu0 0.0
    %206 = vmatprep.subr.mxu0 0.0
    %207 = vmatpush1.msra.mxu0 0.0
    %208 = vmatprep.subr.mxu0 0.0
    %209 = vmatpush1.msra.mxu0 0.0
    %210 = vmatprep.subr.mxu0 0.0
    %211 = vmatpush1.msra.mxu0 0.0
    %212 = vmatprep.subr.mxu0 0.0
    %213 = vmatpush1.msra.mxu0 0.0
    %214 = vmatprep.subr.mxu0 0.0
    %215 = vmatpush1.msra.mxu0 0.0
    %216 = vmatprep.subr.mxu0 0.0
    %217 = vmatpush1.msra.mxu0 0.0
    %218 = vmatprep.subr.mxu0 0.0
    %219 = vmatpush1.msra.mxu0 0.0
    %220 = vmatprep.subr.mxu0 0.0
    %221 = vmatpush1.msra.mxu0 0.0
    %222 = vmatprep.subr.mxu0 0.0
    %223 = vmatpush1.msra.mxu0 0.0
    %224 = vmatprep.subr.mxu0 0.0
    %225 = vmatpush1.msra.mxu0 0.0
    %226 = vmatprep.subr.mxu0 0.0
    %227 = vmatpush1.msra.mxu0 0.0
    %228 = vmatprep.subr.mxu0 0.0
    %229 = vmatpush1.msra.mxu0 0.0
    %230 = vmatprep.subr.mxu0 0.0
    %231 = vmatpush1.msra.mxu0 0.0
    %232 = vmatprep.mubr.f32.mxu0 0.0
    %233 = vmatmul.mubr.f32.gmra.mrb[0].mxu0 %v96
    %v234 = vpop.f32.mrb[0].mxu0
    %v235 = vadd.f32 0.0, %v234
    %v236 = vpop.f32.mrb[0].mxu0
    %237 = vdwg.mxu0
    %v239 = vsel %vm94, %v85, 0
    %241 = vmatprep.subr.mxu0 0.0
    %242 = vmatpush1.msra.mxu0 %v86
    %243 = vmatprep.subr.mxu0 0.0
    %244 = vmatpush1.msra.mxu0 %v87
    %245 = vmatprep.subr.mxu0 0.0
    %246 = vmatpush1.msra.mxu0 %v88
    %247 = vmatprep.subr.mxu0 0.0
    %248 = vmatpush1.msra.mxu0 %v89
    %249 = vmatprep.subr.mxu0 0.0
    %250 = vmatpush1.msra.mxu0 0.0
    %251 = vmatprep.subr.mxu0 0.0
    %252 = vmatpush1.msra.mxu0 0.0
    %253 = vmatprep.subr.mxu0 0.0
    %254 = vmatpush1.msra.mxu0 0.0
    %255 = vmatprep.subr.mxu0 0.0
    %256 = vmatpush1.msra.mxu0 0.0
    %257 = vmatprep.subr.mxu0 0.0
    %258 = vmatpush1.msra.mxu0 0.0
    %259 = vmatprep.subr.mxu0 0.0
    %260 = vmatpush1.msra.mxu0 0.0
    %261 = vmatprep.subr.mxu0 0.0
    %262 = vmatpush1.msra.mxu0 0.0
    %263 = vmatprep.subr.mxu0 0.0
    %264 = vmatpush1.msra.mxu0 0.0
    %265 = vmatprep.subr.mxu0 0.0
    %266 = vmatpush1.msra.mxu0 0.0
    %267 = vmatprep.subr.mxu0 0.0
    %268 = vmatpush1.msra.mxu0 0.0
    %269 = vmatprep.subr.mxu0 0.0
    %270 = vmatpush1.msra.mxu0 0.0
    %271 = vmatprep.subr.mxu0 0.0
    %272 = vmatpush1.msra.mxu0 0.0
    %273 = vmatprep.subr.mxu0 0.0
    %274 = vmatpush1.msra.mxu0 0.0
    %275 = vmatprep.subr.mxu0 0.0
    %276 = vmatpush1.msra.mxu0 0.0
    %277 = vmatprep.subr.mxu0 0.0
    %278 = vmatpush1.msra.mxu0 0.0
    %279 = vmatprep.subr.mxu0 0.0
    %280 = vmatpush1.msra.mxu0 0.0
    %281 = vmatprep.subr.mxu0 0.0
    %282 = vmatpush1.msra.mxu0 0.0
    %283 = vmatprep.subr.mxu0 0.0
    %284 = vmatpush1.msra.mxu0 0.0
    %285 = vmatprep.subr.mxu0 0.0
    %286 = vmatpush1.msra.mxu0 0.0
    %287 = vmatprep.subr.mxu0 0.0
    %288 = vmatpush1.msra.mxu0 0.0
    %289 = vmatprep.subr.mxu0 0.0
    %290 = vmatpush1.msra.mxu0 0.0
    %291 = vmatprep.subr.mxu0 0.0
    %292 = vmatpush1.msra.mxu0 0.0
    %293 = vmatprep.subr.mxu0 0.0
    %294 = vmatpush1.msra.mxu0 0.0
    %295 = vmatprep.subr.mxu0 0.0
    %296 = vmatpush1.msra.mxu0 0.0
    %297 = vmatprep.subr.mxu0 0.0
    %298 = vmatpush1.msra.mxu0 0.0
    %299 = vmatprep.subr.mxu0 0.0
    %300 = vmatpush1.msra.mxu0 0.0
    %301 = vmatprep.subr.mxu0 0.0
    %302 = vmatpush1.msra.mxu0 0.0
    %303 = vmatprep.subr.mxu0 0.0
    %304 = vmatpush1.msra.mxu0 0.0
    %305 = vmatprep.mubr.f32.mxu0 0.0
    %306 = vmatmul.mubr.f32.gmra.mrb[0].mxu0 %v239
    %v307 = vpop.f32.mrb[0].mxu0
    %v308 = vadd.f32 0.0, %v307
    %v309 = vpop.f32.mrb[0].mxu0
    %310 = vdwg.mxu0
    %311 = vmatprep.subr.mxu0 0.0
    %312 = vmatpush1.msra.mxu0 %v90
    %313 = vmatprep.subr.mxu0 0.0
    %314 = vmatpush1.msra.mxu0 %v91
    %315 = vmatprep.subr.mxu0 0.0
    %316 = vmatpush1.msra.mxu0 %v92
    %317 = vmatprep.subr.mxu0 0.0
    %318 = vmatpush1.msra.mxu0 %v93
    %319 = vmatprep.subr.mxu0 0.0
    %320 = vmatpush1.msra.mxu0 0.0
    %321 = vmatprep.subr.mxu0 0.0
    %322 = vmatpush1.msra.mxu0 0.0
    %323 = vmatprep.subr.mxu0 0.0
    %324 = vmatpush1.msra.mxu0 0.0
    %325 = vmatprep.subr.mxu0 0.0
    %326 = vmatpush1.msra.mxu0 0.0
    %327 = vmatprep.subr.mxu0 0.0
    %328 = vmatpush1.msra.mxu0 0.0
    %329 = vmatprep.subr.mxu0 0.0
    %330 = vmatpush1.msra.mxu0 0.0
    %331 = vmatprep.subr.mxu0 0.0
    %332 = vmatpush1.msra.mxu0 0.0
    %333 = vmatprep.subr.mxu0 0.0
    %334 = vmatpush1.msra.mxu0 0.0
    %335 = vmatprep.subr.mxu0 0.0
    %336 = vmatpush1.msra.mxu0 0.0
    %337 = vmatprep.subr.mxu0 0.0
    %338 = vmatpush1.msra.mxu0 0.0
    %339 = vmatprep.subr.mxu0 0.0
    %340 = vmatpush1.msra.mxu0 0.0
    %341 = vmatprep.subr.mxu0 0.0
    %342 = vmatpush1.msra.mxu0 0.0
    %343 = vmatprep.subr.mxu0 0.0
    %344 = vmatpush1.msra.mxu0 0.0
    %345 = vmatprep.subr.mxu0 0.0
    %346 = vmatpush1.msra.mxu0 0.0
    %347 = vmatprep.subr.mxu0 0.0
    %348 = vmatpush1.msra.mxu0 0.0
    %349 = vmatprep.subr.mxu0 0.0
    %350 = vmatpush1.msra.mxu0 0.0
    %351 = vmatprep.subr.mxu0 0.0
    %352 = vmatpush1.msra.mxu0 0.0
    %353 = vmatprep.subr.mxu0 0.0
    %354 = vmatpush1.msra.mxu0 0.0
    %355 = vmatprep.subr.mxu0 0.0
    %356 = vmatpush1.msra.mxu0 0.0
    %357 = vmatprep.subr.mxu0 0.0
    %358 = vmatpush1.msra.mxu0 0.0
    %359 = vmatprep.subr.mxu0 0.0
    %360 = vmatpush1.msra.mxu0 0.0
    %361 = vmatprep.subr.mxu0 0.0
    %362 = vmatpush1.msra.mxu0 0.0
    %363 = vmatprep.subr.mxu0 0.0
    %364 = vmatpush1.msra.mxu0 0.0
    %365 = vmatprep.subr.mxu0 0.0
    %366 = vmatpush1.msra.mxu0 0.0
    %367 = vmatprep.subr.mxu0 0.0
    %368 = vmatpush1.msra.mxu0 0.0
    %369 = vmatprep.subr.mxu0 0.0
    %370 = vmatpush1.msra.mxu0 0.0
    %371 = vmatprep.subr.mxu0 0.0
    %372 = vmatpush1.msra.mxu0 0.0
    %373 = vmatprep.subr.mxu0 0.0
    %374 = vmatpush1.msra.mxu0 0.0
    %375 = vmatprep.mubr.f32.mxu0 0.0
    %376 = vmatmul.mubr.f32.gmra.mrb[0].mxu0 %v239
    %v377 = vpop.f32.mrb[0].mxu0
    %v378 = vadd.f32 0.0, %v377
    %v379 = vpop.f32.mrb[0].mxu0
    %380 = vdwg.mxu0
    %v382 = vsel %vm94, %v84, 0
    %384 = vmatprep.subr.mxu0 0.0
    %385 = vmatpush1.msra.mxu0 %v86
    %386 = vmatprep.subr.mxu0 0.0
    %387 = vmatpush1.msra.mxu0 %v87
    %388 = vmatprep.subr.mxu0 0.0
    %389 = vmatpush1.msra.mxu0 %v88
    %390 = vmatprep.subr.mxu0 0.0
    %391 = vmatpush1.msra.mxu0 %v89
    %392 = vmatprep.subr.mxu0 0.0
    %393 = vmatpush1.msra.mxu0 0.0
    %394 = vmatprep.subr.mxu0 0.0
    %395 = vmatpush1.msra.mxu0 0.0
    %396 = vmatprep.subr.mxu0 0.0
    %397 = vmatpush1.msra.mxu0 0.0
    %398 = vmatprep.subr.mxu0 0.0
    %399 = vmatpush1.msra.mxu0 0.0
    %400 = vmatprep.subr.mxu0 0.0
    %401 = vmatpush1.msra.mxu0 0.0
    %402 = vmatprep.subr.mxu0 0.0
    %403 = vmatpush1.msra.mxu0 0.0
    %404 = vmatprep.subr.mxu0 0.0
    %405 = vmatpush1.msra.mxu0 0.0
    %406 = vmatprep.subr.mxu0 0.0
    %407 = vmatpush1.msra.mxu0 0.0
    %408 = vmatprep.subr.mxu0 0.0
    %409 = vmatpush1.msra.mxu0 0.0
    %410 = vmatprep.subr.mxu0 0.0
    %411 = vmatpush1.msra.mxu0 0.0
    %412 = vmatprep.subr.mxu0 0.0
    %413 = vmatpush1.msra.mxu0 0.0
    %414 = vmatprep.subr.mxu0 0.0
    %415 = vmatpush1.msra.mxu0 0.0
    %416 = vmatprep.subr.mxu0 0.0
    %417 = vmatpush1.msra.mxu0 0.0
    %418 = vmatprep.subr.mxu0 0.0
    %419 = vmatpush1.msra.mxu0 0.0
    %420 = vmatprep.subr.mxu0 0.0
    %421 = vmatpush1.msra.mxu0 0.0
    %422 = vmatprep.subr.mxu0 0.0
    %423 = vmatpush1.msra.mxu0 0.0
    %424 = vmatprep.subr.mxu0 0.0
    %425 = vmatpush1.msra.mxu0 0.0
    %426 = vmatprep.subr.mxu0 0.0
    %427 = vmatpush1.msra.mxu0 0.0
    %428 = vmatprep.subr.mxu0 0.0
    %429 = vmatpush1.msra.mxu0 0.0
    %430 = vmatprep.subr.mxu0 0.0
    %431 = vmatpush1.msra.mxu0 0.0
    %432 = vmatprep.subr.mxu0 0.0
    %433 = vmatpush1.msra.mxu0 0.0
    %434 = vmatprep.subr.mxu0 0.0
    %435 = vmatpush1.msra.mxu0 0.0
    %436 = vmatprep.subr.mxu0 0.0
    %437 = vmatpush1.msra.mxu0 0.0
    %438 = vmatprep.subr.mxu0 0.0
    %439 = vmatpush1.msra.mxu0 0.0
    %440 = vmatprep.subr.mxu0 0.0
    %441 = vmatpush1.msra.mxu0 0.0
    %442 = vmatprep.subr.mxu0 0.0
    %443 = vmatpush1.msra.mxu0 0.0
    %444 = vmatprep.subr.mxu0 0.0
    %445 = vmatpush1.msra.mxu0 0.0
    %446 = vmatprep.subr.mxu0 0.0
    %447 = vmatpush1.msra.mxu0 0.0
    %448 = vmatprep.mubr.f32.mxu0 0.0
    %449 = vmatmul.mubr.f32.gmra.mrb[0].mxu0 %v382
    %v450 = vpop.f32.mrb[0].mxu0
    %v451 = vadd.f32 0.0, %v450
    %v452 = vpop.f32.mrb[0].mxu0
    %453 = vdwg.mxu0
    %454 = vmatprep.subr.mxu0 0.0
    %455 = vmatpush1.msra.mxu0 %v90
    %456 = vmatprep.subr.mxu0 0.0
    %457 = vmatpush1.msra.mxu0 %v91
    %458 = vmatprep.subr.mxu0 0.0
    %459 = vmatpush1.msra.mxu0 %v92
    %460 = vmatprep.subr.mxu0 0.0
    %461 = vmatpush1.msra.mxu0 %v93
    %462 = vmatprep.subr.mxu0 0.0
    %463 = vmatpush1.msra.mxu0 0.0
    %464 = vmatprep.subr.mxu0 0.0
    %465 = vmatpush1.msra.mxu0 0.0
    %466 = vmatprep.subr.mxu0 0.0
    %467 = vmatpush1.msra.mxu0 0.0
    %468 = vmatprep.subr.mxu0 0.0
    %469 = vmatpush1.msra.mxu0 0.0
    %470 = vmatprep.subr.mxu0 0.0
    %471 = vmatpush1.msra.mxu0 0.0
    %472 = vmatprep.subr.mxu0 0.0
    %473 = vmatpush1.msra.mxu0 0.0
    %474 = vmatprep.subr.mxu0 0.0
    %475 = vmatpush1.msra.mxu0 0.0
    %476 = vmatprep.subr.mxu0 0.0
    %477 = vmatpush1.msra.mxu0 0.0
    %478 = vmatprep.subr.mxu0 0.0
    %479 = vmatpush1.msra.mxu0 0.0
    %480 = vmatprep.subr.mxu0 0.0
    %481 = vmatpush1.msra.mxu0 0.0
    %482 = vmatprep.subr.mxu0 0.0
    %483 = vmatpush1.msra.mxu0 0.0
    %484 = vmatprep.subr.mxu0 0.0
    %485 = vmatpush1.msra.mxu0 0.0
    %486 = vmatprep.subr.mxu0 0.0
    %487 = vmatpush1.msra.mxu0 0.0
    %488 = vmatprep.subr.mxu0 0.0
    %489 = vmatpush1.msra.mxu0 0.0
    %490 = vmatprep.subr.mxu0 0.0
    %491 = vmatpush1.msra.mxu0 0.0
    %492 = vmatprep.subr.mxu0 0.0
    %493 = vmatpush1.msra.mxu0 0.0
    %494 = vmatprep.subr.mxu0 0.0
    %495 = vmatpush1.msra.mxu0 0.0
    %496 = vmatprep.subr.mxu0 0.0
    %497 = vmatpush1.msra.mxu0 0.0
    %498 = vmatprep.subr.mxu0 0.0
    %499 = vmatpush1.msra.mxu0 0.0
    %500 = vmatprep.subr.mxu0 0.0
    %501 = vmatpush1.msra.mxu0 0.0
    %502 = vmatprep.subr.mxu0 0.0
    %503 = vmatpush1.msra.mxu0 0.0
    %504 = vmatprep.subr.mxu0 0.0
    %505 = vmatpush1.msra.mxu0 0.0
    %506 = vmatprep.subr.mxu0 0.0
    %507 = vmatpush1.msra.mxu0 0.0
    %508 = vmatprep.subr.mxu0 0.0
    %509 = vmatpush1.msra.mxu0 0.0
    %510 = vmatprep.subr.mxu0 0.0
    %511 = vmatpush1.msra.mxu0 0.0
    %512 = vmatprep.subr.mxu0 0.0
    %513 = vmatpush1.msra.mxu0 0.0
    %514 = vmatprep.subr.mxu0 0.0
    %515 = vmatpush1.msra.mxu0 0.0
    %516 = vmatprep.subr.mxu0 0.0
    %517 = vmatpush1.msra.mxu0 0.0
    %518 = vmatprep.mubr.f32.mxu0 0.0
    %519 = vmatmul.mubr.f32.gmra.mrb[0].mxu0 %v382
    %v520 = vpop.f32.mrb[0].mxu0
    %v521 = vadd.f32 0.0, %v520
    %v522 = vpop.f32.mrb[0].mxu0
    %523 = vdwg.mxu0
    %v524 = vmul.f32 %v165, %v308
    %v525 = vmul.f32 %v235, %v378
    %v526 = vadd.f32 %v524, %v525
    %v527 = vmul.f32 %v235, %v308
    %v528 = vmul.f32 %v165, %v378
    %v529 = vsub.f32 %v527, %v528
    %v530 = vmul.f32 %v526, %v451
    %v531 = vmul.f32 %v529, %v521
    %v532 = vsub.f32 %v530, %v531
    %533 = vxpose.xlu0.b32.start [1/16] %v532, 128
    %534 = vxpose.xlu0.b32.cont [2/16] 0.0, 128
    %535 = vxpose.xlu0.b32.cont [3/16] 0.0, 128
    %536 = vxpose.xlu0.b32.cont [4/16] 0.0, 128
    %537 = vxpose.xlu0.b32.cont [5/16] 0.0, 128
    %538 = vxpose.xlu0.b32.cont [6/16] 0.0, 128
    %539 = vxpose.xlu0.b32.cont [7/16] 0.0, 128
    %540 = vxpose.xlu0.b32.cont [8/16] 0.0, 128
    %541 = vxpose.xlu0.b32.cont [9/16] 0.0, 128
    %542 = vxpose.xlu0.b32.cont [10/16] 0.0, 128
    %543 = vxpose.xlu0.b32.cont [11/16] 0.0, 128
    %544 = vxpose.xlu0.b32.cont [12/16] 0.0, 128
    %545 = vxpose.xlu0.b32.cont [13/16] 0.0, 128
    %546 = vxpose.xlu0.b32.cont [14/16] 0.0, 128
    %547 = vxpose.xlu0.b32.cont [15/16] 0.0, 128
    %548 = vxpose.xlu0.b32.end [16/16] 0.0, 128
    %v549 = vpop.trf.xlu0
    %v550 = vpop.trf.xlu0
    %v551 = vpop.trf.xlu0
    %v552 = vpop.trf.xlu0
    %v553 = vpop.trf.xlu0
    %v554 = vpop.trf.xlu0
    %v555 = vpop.trf.xlu0
    %v556 = vpop.trf.xlu0
    %v557 = vpop.trf.xlu0
    %v558 = vpop.trf.xlu0
    %v559 = vpop.trf.xlu0
    %v560 = vpop.trf.xlu0
    %v561 = vpop.trf.xlu0
    %v562 = vpop.trf.xlu0
    %v563 = vpop.trf.xlu0
    %v564 = vpop.trf.xlu0
    %vm565 = vcmask 64512
    %v566 = vsel %vm565, %v549, 0.0
    %v567 = vsel %vm565, %v550, 0.0
    %v568 = vadd.f32 %v566, %v567
    %v569 = vsel %vm565, %v551, 0.0
    %v570 = vadd.f32 %v568, %v569
    %v571 = vsel %vm565, %v552, 0.0
    %v572 = vadd.f32 %v570, %v571
    %v573 = vrot.slane %v572, 4
    %v574 = vadd.f32 %v572, %v573
    %v575 = vrot.slane %v574, 2
    %v576 = vadd.f32 %v574, %v575
    %v577 = vrot.slane %v576, 1
    %v578 = vadd.f32 %v576, %v577
    %v579 = vmul.f32 %v578, 0.03125
    %vm580 = vcmask 57344
    %581 = vst.msk [vmem:[#allocation11] sm:$0x1] %vm580, %v579
    // Predicated region
    $region42: #{tpu_custom_call.1} parent=1 // pred_check
      _
    $region43: #{tpu_custom_call.1} parent=1 // pred_check_branch
      %583 = sbr.rel (0) target = $region45
    $region44: #{tpu_custom_call.1} parent=1 // pred_region
      %s585 = ssub.s32 16, 16
      %586 = vsyncadd [#allocation4], %s585
      %s588 = sshll.u32 [#allocation11], 4
      %s589 = int_to_ptr.vmem [resolvable:$true] %s588
      %591 = dma.vmem_to_hbm [thread:$0]  %s589, 16, %s5, [#allocation4]
    $region45: #{tpu_custom_call.1} parent=1 // pred_fallthru
      _
    // Predicated region
    $region46: #{tpu_custom_call.1} parent=1 // pred_check
      _
    $region47: #{tpu_custom_call.1} parent=1 // pred_check_branch
      %593 = sbr.rel (0) target = $region49
    $region48: #{tpu_custom_call.1} parent=1 // pred_region
      %594 = dma.done [#allocation4], 16
    $region49: #{tpu_custom_call.1} parent=1 // pred_fallthru
      _
    %595 = vsyncpa [#allocation3], 1
    %596 = vsyncpa [#allocation6], 1
    %597 = vsyncpa [#allocation9], 1
    %598 = vsyncpa [#allocation4], 1

</llo_original>
